<compile_context>
chip_gen: v7x
topology: tpu7x:2x2x1
jax: 0.10.0
libtpu: 0.0.40
codegen_flags: <defaults>
</compile_context>

<pallas_src>
import functools

import jax
import jax.numpy as jnp
from jax import lax
from jax.experimental import pallas as pl
from jax.experimental.pallas import tpu as pltpu


def _round_up(a: int, b: int) -> int:
    return ((a + b - 1) // b) * b


def _pixel_loss_kernel(x_ref, y_ref, acc_ref, *, option, d_total):
    """Accumulate per-row lane-partial sums of the elementwise loss.

    x_ref, y_ref: (tile_nm, tile_d) VMEM input tiles (original dtype)
    acc_ref:      (tile_nm, 128) resident f32 accumulator (same output block
                  for every step along the reduction axis)
    """
    k = pl.program_id(1)          # reduction axis (last grid dim)
    tile_d = x_ref.shape[1]
    num_chunks = tile_d // 128    # static

    @pl.when(k == 0)
    def _():
        acc_ref[...] = jnp.zeros_like(acc_ref)

    def elem_loss(xc, yc):
        d = xc.astype(jnp.float32) - yc.astype(jnp.float32)
        if option == "mse":
            return d * d
        return jnp.abs(d)         # "l1" (validated in the wrapper)

    def unmasked_body(f, acc):
        start = pl.multiple_of(f * 128, 128)
        return acc + elem_loss(x_ref[:, pl.ds(start, 128)],
                               y_ref[:, pl.ds(start, 128)])

    acc = acc_ref[...]

    if d_total % tile_d == 0:
        # Every chunk of every block is fully in-bounds: no masking at all.
        if num_chunks <= 8:
            acc = lax.fori_loop(0, num_chunks, unmasked_body, acc, unroll=True)
        else:
            acc = lax.fori_loop(0, num_chunks, unmasked_body, acc)
    else:
        # Only the last k block can straddle D.  Run unmasked over the fully
        # valid chunks and mask only the single straddling chunk; chunks that
        # are entirely past D are skipped (they would contribute zero).
        lane = lax.broadcasted_iota(jnp.int32, (1, 128), 1)
        cols_left = d_total - k * tile_d
        n_valid = jnp.minimum(cols_left, tile_d)
        n_full = n_valid // 128            # chunks with all 128 cols valid
        n_any = (n_valid + 127) // 128     # chunks with >= 1 valid col

        def masked_body(f, acc):
            start = pl.multiple_of(f * 128, 128)
            val = elem_loss(x_ref[:, pl.ds(start, 128)],
                            y_ref[:, pl.ds(start, 128)])
            col = k * tile_d + start + lane
            return acc + jnp.where(col < d_total, val, 0.0)

        acc = lax.fori_loop(0, n_full, unmasked_body, acc)
        acc = lax.fori_loop(n_full, n_any, masked_body, acc)

    acc_ref[...] = acc


def _gen_params():
    """(target bytes per input block, vmem_limit_bytes), generation-aware."""
    vmem_phys = 128 * 1024 * 1024
    try:
        vmem_phys = int(pltpu.get_tpu_info().vmem_capacity_bytes)
    except Exception:
        pass
    if vmem_phys <= 64 * 1024 * 1024:
        # v7x-class: 64 MiB VMEM/TC but 3.2 TB/s HBM -> big blocks matter most.
        # 2 inputs x 2 buffers x 7 MiB = 28 MiB of pipeline VMEM.
        return 7 * 1024 * 1024, 44 * 1024 * 1024
    # v5e / v6e: 128 MiB physical VMEM, lower HBM BW -> ~5 MiB blocks suffice.
    return 5 * 1024 * 1024, 48 * 1024 * 1024


def _choose_tile_nm(nm: int, itemsize: int) -> int:
    """Sublane-aligned row block, capped at 128 (accumulator <= 16 vregs),
    split into >= 2 blocks whenever possible so both v7x cores get work."""
    if nm < 8:
        return nm                         # full-dim block (always legal)
    if nm >= 16:
        tile = _round_up(pl.cdiv(nm, 2), 8)     # >= 2 row blocks (megacore)
        if itemsize <= 2:
            t16 = _round_up(tile, 16)           # denser bf16 sublane packing
            if pl.cdiv(nm, t16) >= 2:           # ...only if it stays >= 2 blocks
                tile = t16
    else:
        tile = _round_up(nm, 16 if itemsize <= 2 else 8)
    return min(tile, 128)


def _choose_tiles(nm: int, d: int, itemsize: int):
    tile_nm = _choose_tile_nm(nm, itemsize)
    target_bytes, vmem_limit = _gen_params()
    tile_d = (target_bytes // (tile_nm * itemsize)) // 128 * 128
    tile_d = max(128, min(tile_d, _round_up(d, 128)))
    return tile_nm, tile_d, vmem_limit


def pixel_loss(x, y, option="mse", conf_sigma=None, only_sym_conf=False):
    """Equivalent of PixelLoss.forward for x, y of shape [N, M, C, H, W]."""
    # TODO(synk): conf_sigma / only_sym_conf have no effect in the reference
    # forward; they are accepted and ignored here as well.
    if option not in ("mse", "l1"):
        raise NotImplementedError(f"Unknown pixel loss option: {option}")

    N, M, C, H, W = x.shape
    NM = N * M
    D = C * H * W

    # Keep the input dtype (e.g. bf16) to halve HBM traffic; the kernel
    # upcasts to f32 before computing the loss.  No padding copies.
    x2 = x.reshape(NM, D)
    y2 = y.reshape(NM, D)

    tile_nm, tile_d, vmem_limit = _choose_tiles(NM, D, x2.dtype.itemsize)
    grid = (pl.cdiv(NM, tile_nm), pl.cdiv(D, tile_d))

    partial = pl.pallas_call(
        functools.partial(_pixel_loss_kernel, option=option, d_total=D),
        out_shape=jax.ShapeDtypeStruct((NM, 128), jnp.float32),
        grid_spec=pltpu.PrefetchScalarGridSpec(
            num_scalar_prefetch=0,
            grid=grid,
            in_specs=[
                pl.BlockSpec((tile_nm, tile_d), lambda i, k: (i, k)),
                pl.BlockSpec((tile_nm, tile_d), lambda i, k: (i, k)),
            ],
            # Lane-dense resident accumulator: same output block for every k.
            out_specs=pl.BlockSpec((tile_nm, 128), lambda i, k: (i, 0)),
        ),
        compiler_params=pltpu.CompilerParams(
            dimension_semantics=("parallel", "arbitrary"),
            vmem_limit_bytes=vmem_limit,
        ),
    )(x2, y2)

    # image_loss.mean(dim=[1, 2, 3]) -> per-image mean over C*H*W
    per_image = partial.sum(axis=1) / jnp.float32(D)       # (N*M,)
    # .reshape(N, M).mean(dim=1) then the final .mean()
    return per_image.reshape(N, M).mean(axis=1).mean()


if __name__ == "__main__":
    key = jax.random.PRNGKey(0)
    kx, ky = jax.random.split(key)

    # Small shapes consistent with the forward: x, y in [N, M, C, H, W].
    N, M, C, H, W = 2, 2, 3, 16, 16
    x = jax.random.normal(kx, (N, M, C, H, W), dtype=jnp.float32)
    y = jax.random.normal(ky, (N, M, C, H, W), dtype=jnp.float32)

    # mse: uniform means collapse to the global mean of (x - y)^2.
    out = jax.block_until_ready(pixel_loss(x, y, option="mse"))
    ref = jnp.mean((x - y) ** 2)
    assert jnp.allclose(out, ref, rtol=1e-5, atol=1e-5), (out, ref)

    # l1
    out_l1 = jax.block_until_ready(pixel_loss(x, y, option="l1"))
    ref_l1 = jnp.mean(jnp.abs(x - y))
    assert jnp.allclose(out_l1, ref_l1, rtol=1e-5, atol=1e-5), (out_l1, ref_l1)

    # Non-128-divisible feature axis (exercises the in-kernel column mask).
    C2, H2, W2 = 3, 10, 10
    x3 = jax.random.normal(kx, (N, M, C2, H2, W2), dtype=jnp.float32)
    y3 = jax.random.normal(ky, (N, M, C2, H2, W2), dtype=jnp.float32)
    out3 = jax.block_until_ready(pixel_loss(x3, y3, option="mse"))
    ref3 = jnp.mean((x3 - y3) ** 2)
    assert jnp.allclose(out3, ref3, rtol=1e-5, atol=1e-5), (out3, ref3)

    # Ragged row blocks (NM=18 -> 2 row blocks with a partial tail) together
    # with the ragged feature tail.
    N4, M4 = 3, 6
    x4 = jax.random.normal(kx, (N4, M4, C2, H2, W2), dtype=jnp.float32)
    y4 = jax.random.normal(ky, (N4, M4, C2, H2, W2), dtype=jnp.float32)
    out4 = jax.block_until_ready(pixel_loss(x4, y4, option="mse"))
    ref4 = jnp.mean((x4 - y4) ** 2)
    assert jnp.allclose(out4, ref4, rtol=1e-5, atol=1e-5), (out4, ref4)

    # bf16 inputs stream as bf16 (half the HBM bytes), f32 accumulation.
    xb = x.astype(jnp.bfloat16)
    yb = y.astype(jnp.bfloat16)
    outb = jax.block_until_ready(pixel_loss(xb, yb, option="mse"))
    refb = jnp.mean((xb.astype(jnp.float32) - yb.astype(jnp.float32)) ** 2)
    assert jnp.allclose(outb, refb, rtol=1e-4, atol=1e-4), (outb, refb)

    print("KERNEL_OK")
</pallas_src>

<mosaic_0001>
module attributes {stable_mosaic.version = 11 : i64} {
  func.func @_pixel_loss_kernel(%arg0: i32, %arg1: i32, %arg2: memref<4x768xf32, #tpu.memory_space<vmem>>, %arg3: memref<4x768xf32, #tpu.memory_space<vmem>>, %arg4: memref<4x128xf32, #tpu.memory_space<vmem>>) attributes {dimension_semantics = [#tpu.dimension_semantics<parallel>, #tpu.dimension_semantics<arbitrary>], iteration_bounds = array<i64: 1, 1>, scalar_prefetch = 0 : i64, scratch_operands = 0 : i64, tpu.core_type = #tpu.core_type<tc>, window_params = [{transform_indices = @transform_0, window_bounds = array<i64: 4, 768>}, {transform_indices = @transform_1, window_bounds = array<i64: 4, 768>}, {transform_indices = @transform_2, window_bounds = array<i64: 4, 128>}]} {
    %c0_i32 = arith.constant 0 : i32
    %0 = arith.cmpi eq, %arg1, %c0_i32 : i32
    %1 = arith.extui %0 : i1 to i32
    %c0_i32_0 = arith.constant 0 : i32
    %2 = arith.cmpi ne, %1, %c0_i32_0 : i32
    scf.if %2 {
      %cst = arith.constant 0.000000e+00 : f32
      %59 = vector.broadcast %cst : f32 to vector<4x128xf32>
      %c0_22 = arith.constant 0 : index
      %c0_23 = arith.constant 0 : index
      %60 = vector.load %arg4[%c0_22, %c0_23] : memref<4x128xf32, #tpu.memory_space<vmem>>, vector<4x128xf32>
      tpu.vector_store %arg4[%c0_22, %c0_23], %59 {strides = array<i32>} : memref<4x128xf32, #tpu.memory_space<vmem>>, vector<4x128xf32>,
    } else {
    }
    %c0 = arith.constant 0 : index
    %c0_1 = arith.constant 0 : index
    %3 = vector.load %arg4[%c0, %c0_1] : memref<4x128xf32, #tpu.memory_space<vmem>>, vector<4x128xf32>
    %c0_i32_2 = arith.constant 0 : i32
    %c128_i32 = arith.constant 128 : i32
    %4 = arith.muli %c0_i32_2, %c128_i32 : i32
    %5 = tpu.assume_multiple %4, 128 : i32
    %c0_3 = arith.constant 0 : index
    %6 = arith.index_cast %5 : i32 to index
    %7 = vector.load %arg2[%c0_3, %6] : memref<4x768xf32, #tpu.memory_space<vmem>>, vector<4x128xf32>
    %c0_4 = arith.constant 0 : index
    %8 = arith.index_cast %5 : i32 to index
    %9 = vector.load %arg3[%c0_4, %8] : memref<4x768xf32, #tpu.memory_space<vmem>>, vector<4x128xf32>
    %10 = arith.subf %7, %9 : vector<4x128xf32>
    %11 = arith.mulf %10, %10 : vector<4x128xf32>
    %12 = arith.addf %3, %11 : vector<4x128xf32>
    %c1_i32 = arith.constant 1 : i32
    %c128_i32_5 = arith.constant 128 : i32
    %13 = arith.muli %c1_i32, %c128_i32_5 : i32
    %14 = tpu.assume_multiple %13, 128 : i32
    %c0_6 = arith.constant 0 : index
    %15 = arith.index_cast %14 : i32 to index
    %16 = vector.load %arg2[%c0_6, %15] : memref<4x768xf32, #tpu.memory_space<vmem>>, vector<4x128xf32>
    %c0_7 = arith.constant 0 : index
    %17 = arith.index_cast %14 : i32 to index
    %18 = vector.load %arg3[%c0_7, %17] : memref<4x768xf32, #tpu.memory_space<vmem>>, vector<4x128xf32>
    %19 = arith.subf %16, %18 : vector<4x128xf32>
    %20 = arith.mulf %19, %19 : vector<4x128xf32>
    %21 = arith.addf %12, %20 : vector<4x128xf32>
    %c2_i32 = arith.constant 2 : i32
    %c128_i32_8 = arith.constant 128 : i32
    %22 = arith.muli %c2_i32, %c128_i32_8 : i32
    %23 = tpu.assume_multiple %22, 128 : i32
    %c0_9 = arith.constant 0 : index
    %24 = arith.index_cast %23 : i32 to index
    %25 = vector.load %arg2[%c0_9, %24] : memref<4x768xf32, #tpu.memory_space<vmem>>, vector<4x128xf32>
    %c0_10 = arith.constant 0 : index
    %26 = arith.index_cast %23 : i32 to index
    %27 = vector.load %arg3[%c0_10, %26] : memref<4x768xf32, #tpu.memory_space<vmem>>, vector<4x128xf32>
    %28 = arith.subf %25, %27 : vector<4x128xf32>
    %29 = arith.mulf %28, %28 : vector<4x128xf32>
    %30 = arith.addf %21, %29 : vector<4x128xf32>
    %c3_i32 = arith.constant 3 : i32
    %c128_i32_11 = arith.constant 128 : i32
    %31 = arith.muli %c3_i32, %c128_i32_11 : i32
    %32 = tpu.assume_multiple %31, 128 : i32
    %c0_12 = arith.constant 0 : index
    %33 = arith.index_cast %32 : i32 to index
    %34 = vector.load %arg2[%c0_12, %33] : memref<4x768xf32, #tpu.memory_space<vmem>>, vector<4x128xf32>
    %c0_13 = arith.constant 0 : index
    %35 = arith.index_cast %32 : i32 to index
    %36 = vector.load %arg3[%c0_13, %35] : memref<4x768xf32, #tpu.memory_space<vmem>>, vector<4x128xf32>
    %37 = arith.subf %34, %36 : vector<4x128xf32>
    %38 = arith.mulf %37, %37 : vector<4x128xf32>
    %39 = arith.addf %30, %38 : vector<4x128xf32>
    %c4_i32 = arith.constant 4 : i32
    %c128_i32_14 = arith.constant 128 : i32
    %40 = arith.muli %c4_i32, %c128_i32_14 : i32
    %41 = tpu.assume_multiple %40, 128 : i32
    %c0_15 = arith.constant 0 : index
    %42 = arith.index_cast %41 : i32 to index
    %43 = vector.load %arg2[%c0_15, %42] : memref<4x768xf32, #tpu.memory_space<vmem>>, vector<4x128xf32>
    %c0_16 = arith.constant 0 : index
    %44 = arith.index_cast %41 : i32 to index
    %45 = vector.load %arg3[%c0_16, %44] : memref<4x768xf32, #tpu.memory_space<vmem>>, vector<4x128xf32>
    %46 = arith.subf %43, %45 : vector<4x128xf32>
    %47 = arith.mulf %46, %46 : vector<4x128xf32>
    %48 = arith.addf %39, %47 : vector<4x128xf32>
    %c5_i32 = arith.constant 5 : i32
    %c128_i32_17 = arith.constant 128 : i32
    %49 = arith.muli %c5_i32, %c128_i32_17 : i32
    %50 = tpu.assume_multiple %49, 128 : i32
    %c0_18 = arith.constant 0 : index
    %51 = arith.index_cast %50 : i32 to index
    %52 = vector.load %arg2[%c0_18, %51] : memref<4x768xf32, #tpu.memory_space<vmem>>, vector<4x128xf32>
    %c0_19 = arith.constant 0 : index
    %53 = arith.index_cast %50 : i32 to index
    %54 = vector.load %arg3[%c0_19, %53] : memref<4x768xf32, #tpu.memory_space<vmem>>, vector<4x128xf32>
    %55 = arith.subf %52, %54 : vector<4x128xf32>
    %56 = arith.mulf %55, %55 : vector<4x128xf32>
    %57 = arith.addf %48, %56 : vector<4x128xf32>
    %c6_i32 = arith.constant 6 : i32
    %c0_20 = arith.constant 0 : index
    %c0_21 = arith.constant 0 : index
    %58 = vector.load %arg4[%c0_20, %c0_21] : memref<4x128xf32, #tpu.memory_space<vmem>>, vector<4x128xf32>
    tpu.vector_store %arg4[%c0_20, %c0_21], %57 {strides = array<i32>} : memref<4x128xf32, #tpu.memory_space<vmem>>, vector<4x128xf32>,
    return
  }
  func.func @transform_0(%arg0: i32, %arg1: i32) -> (i32, i32) {
    %c0_i32 = arith.constant 0 : i32
    return %arg0, %arg1 : i32, i32
  }
  func.func @transform_1(%arg0: i32, %arg1: i32) -> (i32, i32) {
    %c0_i32 = arith.constant 0 : i32
    return %arg0, %arg1 : i32, i32
  }
  func.func @transform_2(%arg0: i32, %arg1: i32) -> (i32, i32) {
    %c0_i32 = arith.constant 0 : i32
    %c0_i32_0 = arith.constant 0 : i32
    return %arg0, %c0_i32 : i32, i32
  }
}

</mosaic_0001>

<llo_original>
// kernel: tpu_custom_call.1
$region0: #{tpu_custom_call.1}
  #allocation0 [shape = 'u32[]', space=smem, size = 0x4, offset = 0x4, fixed_abs, tag = 'smem constant byte address 0x4 - core index']
  #allocation1 [shape = 'u32[144,128]{1,0:T(1,128)}', space=vmem, size = 0x12000, scoped, tag = 'internal scratch']
  %s0 = inlined_call_operand.hbm [shape: f32[4,768], index: 0, kind: input, shape index: {}]
  %s1 = inlined_call_operand.hbm [shape: f32[4,768], index: 1, kind: input, shape index: {}]
  %s2 = inlined_call_operand.hbm [shape: f32[4,128], index: 2, kind: output, shape index: {}]
  %s3 = sld [smem:[#allocation0]]
  $region30: #{tpu_custom_call.1} parent=0
    _
  %s5 = ssub.s32 1, %s3
  %s6 = scalar_select 0, %s5, %s3
  $region1: #{tpu_custom_call.1} parent=0
    #allocation2 [shape = 'u8[12288]{0}', space=vmem, size = 0x3000, scoped, tag = 'input window, operand 0, single buffered']
    #allocation3 [shape = 's32[1]{0}', space=sflag, size = 0x4, scoped, tag = 'scoped memory for tpu_custom_call.1']
    #allocation4 [shape = 's32[1]{0}', space=sflag, size = 0x4, scoped, tag = 'scoped memory for tpu_custom_call.1']
    #allocation5 [shape = 'u8[12288]{0}', space=vmem, size = 0x3000, scoped, tag = 'input window, operand 1, single buffered']
    #allocation6 [shape = 's32[1]{0}', space=sflag, size = 0x4, scoped, tag = 'scoped memory for tpu_custom_call.1']
    #allocation7 [shape = 'u8[2048]{0}', space=vmem, size = 0x800, scoped, tag = 'output window, operand 0, single buffered']
    %7 = vsyncpa [#allocation3], 0
    %8 = vsyncpa [#allocation6], 0
    %9 = vsyncpa [#allocation4], 0
    // Predicated region
    $region2: #{tpu_custom_call.1} parent=1 // pred_check
      _
    $region3: #{tpu_custom_call.1} parent=1 // pred_check_branch
      %11 = sbr.rel (0) target = $region5
    $region4: #{tpu_custom_call.1} parent=1 // pred_region
      %s13 = ssub.s32 384, 384
      %14 = vsyncadd [#allocation3], %s13
      %s16 = sshll.u32 [#allocation2], 4
      %s17 = int_to_ptr.vmem [resolvable:$true] %s16
      %19 = dma.hbm_to_vmem [thread:$0]  %s0, 384, %s17, [#allocation3]
    $region5: #{tpu_custom_call.1} parent=1 // pred_fallthru
      _
    // Predicated region
    $region6: #{tpu_custom_call.1} parent=1 // pred_check
      _
    $region7: #{tpu_custom_call.1} parent=1 // pred_check_branch
      %21 = sbr.rel (0) target = $region9
    $region8: #{tpu_custom_call.1} parent=1 // pred_region
      %s23 = ssub.s32 384, 384
      %24 = vsyncadd [#allocation6], %s23
      %s26 = sshll.u32 [#allocation5], 4
      %s27 = int_to_ptr.vmem [resolvable:$true] %s26
      %29 = dma.hbm_to_vmem [thread:$0]  %s1, 384, %s27, [#allocation6]
    $region9: #{tpu_custom_call.1} parent=1 // pred_fallthru
      _
    // Predicated region
    $region10: #{tpu_custom_call.1} parent=1 // pred_check
      _
    $region11: #{tpu_custom_call.1} parent=1 // pred_check_branch
      %31 = sbr.rel (0) target = $region13
    $region12: #{tpu_custom_call.1} parent=1 // pred_region
      %32 = dma.done [#allocation3], 384
    $region13: #{tpu_custom_call.1} parent=1 // pred_fallthru
      _
    // Predicated region
    $region14: #{tpu_custom_call.1} parent=1 // pred_check
      _
    $region15: #{tpu_custom_call.1} parent=1 // pred_check_branch
      %34 = sbr.rel (0) target = $region17
    $region16: #{tpu_custom_call.1} parent=1 // pred_region
      %35 = dma.done [#allocation6], 384
    $region17: #{tpu_custom_call.1} parent=1 // pred_fallthru
      _
    %p36 = scmp.eq.s32.totalorder 0, 0
    // Predicated region
    $region18: #{tpu_custom_call.1} parent=1 // pred_check
      %p37 = pneg %p36
    $region19: #{tpu_custom_call.1} parent=1 // pred_check_branch
      %39 = sbr.rel (%p37) target = $region21
    $region20: #{tpu_custom_call.1} parent=1 // pred_region
      %40 = vst [vmem:[#allocation7] sm:$0xf] 0.0
    $region21: #{tpu_custom_call.1} parent=1 // pred_fallthru
      _
    %v41 = vld [vmem:[#allocation7] sm:$0xf]
    %v42 = vld [vmem:[#allocation2] sm:$0xf]
    %v43 = vld [vmem:[#allocation5] sm:$0xf]
    %v44 = vsub.f32 %v42, %v43
    %v45 = vmul.f32 %v44, %v44
    %v46 = vadd.f32 %v41, %v45
    %s47 = scalar_lea.vmem [#allocation2], 4
    %v48 = vld [vmem:[%s47] sm:$0xf]
    %s49 = scalar_lea.vmem [#allocation5], 4
    %v50 = vld [vmem:[%s49] sm:$0xf]
    %v51 = vsub.f32 %v48, %v50
    %v52 = vmul.f32 %v51, %v51
    %v53 = vadd.f32 %v46, %v52
    %s54 = scalar_lea.vmem [#allocation2], 8
    %v55 = vld [vmem:[%s54] sm:$0xf]
    %s56 = scalar_lea.vmem [#allocation5], 8
    %v57 = vld [vmem:[%s56] sm:$0xf]
    %v58 = vsub.f32 %v55, %v57
    %v59 = vmul.f32 %v58, %v58
    %v60 = vadd.f32 %v53, %v59
    %s61 = scalar_lea.vmem [#allocation2], 12
    %v62 = vld [vmem:[%s61] sm:$0xf]
    %s63 = scalar_lea.vmem [#allocation5], 12
    %v64 = vld [vmem:[%s63] sm:$0xf]
    %v65 = vsub.f32 %v62, %v64
    %v66 = vmul.f32 %v65, %v65
    %v67 = vadd.f32 %v60, %v66
    %s68 = scalar_lea.vmem [#allocation2], 16
    %v69 = vld [vmem:[%s68] sm:$0xf]
    %s70 = scalar_lea.vmem [#allocation5], 16
    %v71 = vld [vmem:[%s70] sm:$0xf]
    %v72 = vsub.f32 %v69, %v71
    %v73 = vmul.f32 %v72, %v72
    %v74 = vadd.f32 %v67, %v73
    %s75 = scalar_lea.vmem [#allocation2], 20
    %v76 = vld [vmem:[%s75] sm:$0xf]
    %s77 = scalar_lea.vmem [#allocation5], 20
    %v78 = vld [vmem:[%s77] sm:$0xf]
    %v79 = vsub.f32 %v76, %v78
    %v80 = vmul.f32 %v79, %v79
    %v81 = vadd.f32 %v74, %v80
    %82 = vst [vmem:[#allocation7] sm:$0xf] %v81
    // Predicated region
    $region22: #{tpu_custom_call.1} parent=1 // pred_check
      _
    $region23: #{tpu_custom_call.1} parent=1 // pred_check_branch
      %84 = sbr.rel (0) target = $region25
    $region24: #{tpu_custom_call.1} parent=1 // pred_region
      %s86 = ssub.s32 64, 64
      %87 = vsyncadd [#allocation4], %s86
      %s89 = sshll.u32 [#allocation7], 4
      %s90 = int_to_ptr.vmem [resolvable:$true] %s89
      %92 = dma.vmem_to_hbm [thread:$0]  %s90, 64, %s2, [#allocation4]
    $region25: #{tpu_custom_call.1} parent=1 // pred_fallthru
      _
    // Predicated region
    $region26: #{tpu_custom_call.1} parent=1 // pred_check
      _
    $region27: #{tpu_custom_call.1} parent=1 // pred_check_branch
      %94 = sbr.rel (0) target = $region29
    $region28: #{tpu_custom_call.1} parent=1 // pred_region
      %95 = dma.done [#allocation4], 64
    $region29: #{tpu_custom_call.1} parent=1 // pred_fallthru
      _
    %96 = vsyncpa [#allocation3], 1
    %97 = vsyncpa [#allocation6], 1
    %98 = vsyncpa [#allocation4], 1

</llo_original>
